<compile_context>
chip_gen: v6e
topology: v6e:2x2x1
jax: 0.10.0
libtpu: 0.0.40
codegen_flags: <defaults>
</compile_context>

<pallas_src>
import jax
import jax.numpy as jnp
from jax.experimental import pallas as pl
from jax.experimental.pallas import tpu as pltpu


def mlp_kernel(x_ref, w1_ref, b1_ref, w2_ref, b2_ref,
               w3_ref, b3_ref, w4_ref, b4_ref, o_ref):
    # x tile: (TB, 784) f32, streamed from HBM once; params are VMEM-resident.
    x = x_ref[...]

    # Layer 1: (TB,784) @ (784,8) -> f32 acc, + bias, ReLU
    h = jnp.dot(x, w1_ref[...], preferred_element_type=jnp.float32) + b1_ref[...]
    h = jnp.maximum(h, 0.0)

    # Layer 2: (TB,8) @ (8,8) + (1,8) -> ReLU
    h = jnp.dot(h, w2_ref[...], preferred_element_type=jnp.float32) + b2_ref[...]
    h = jnp.maximum(h, 0.0)

    # Layer 3: (TB,8) @ (8,8) + (1,8) -> ReLU
    h = jnp.dot(h, w3_ref[...], preferred_element_type=jnp.float32) + b3_ref[...]
    h = jnp.maximum(h, 0.0)

    # Layer 4 (no activation): (TB,8) @ (8,10) + (1,10)
    logits = jnp.dot(h, w4_ref[...], preferred_element_type=jnp.float32) + b4_ref[...]

    # log_softmax along the class axis (dim=1), numerically stable.
    # max/sum go to the XLU, exp to the EUP -- both have slack.
    m = jnp.max(logits, axis=-1, keepdims=True)
    shifted = logits - m
    lse = jnp.log(jnp.sum(jnp.exp(shifted), axis=-1, keepdims=True))
    o_ref[...] = shifted - lse


def _round_up(n, m):
    return ((n + m - 1) // m) * m


def net_forward(x, params, tb=2048):
    """x: (B, 784) float32. params: dict name -> (w (in,out), b (1,out)).

    tb: batch tile (multiple of 8; 2048 default works on v5e/v6e/v7x).  For
    v6e/v7x with large batches, 4096-8192 amortizes per-step overhead further;
    the VMEM limit is raised automatically when needed.
    """
    B, D = x.shape
    w1, b1 = params["net1"]
    w2, b2 = params["net2"]
    w3, b3 = params["net3"]
    w4, b4 = params["net4"]

    # Batch tile: multiple of 8 (sublane constraint), no larger than needed.
    TB = min(tb, max(8, _round_up(B, 8)))
    grid = (pl.cdiv(B, TB),)   # boundary block may be partial; no jnp.pad pass.

    def resident(shape):
        # Whole-array block, same block index every grid step -> stays in VMEM.
        return pl.BlockSpec(shape, lambda i: (0, 0))

    # Rough VMEM estimate: double-buffered x tile + out tile + resident params.
    param_bytes = sum(w.size * 4 + b.size * 4 for (w, b) in params.values())
    vmem_est = 2 * (TB * D * 4 + TB * 10 * 4) + param_bytes
    compiler_kwargs = dict(dimension_semantics=("parallel",))
    if vmem_est > (14 << 20):
        # Only needed for large tiles (e.g. TB >= 4096); cap below v7x physical.
        compiler_kwargs["vmem_limit_bytes"] = min(vmem_est + (4 << 20), 56 << 20)

    out = pl.pallas_call(
        mlp_kernel,
        out_shape=jax.ShapeDtypeStruct((B, 10), jnp.float32),
        grid_spec=pltpu.PrefetchScalarGridSpec(
            num_scalar_prefetch=0,
            grid=grid,
            in_specs=[
                pl.BlockSpec((TB, D), lambda i: (i, 0)),   # x: tiled over batch
                resident(w1.shape), resident(b1.shape),
                resident(w2.shape), resident(b2.shape),
                resident(w3.shape), resident(b3.shape),
                resident(w4.shape), resident(b4.shape),
            ],
            out_specs=pl.BlockSpec((TB, 10), lambda i: (i, 0)),
        ),
        compiler_params=pltpu.CompilerParams(**compiler_kwargs),
    )(x, w1, b1, w2, b2, w3, b3, w4, b4)

    return out


def init_params(key):
    """Deterministic init matching the nn.Linear shapes of Net.__init__."""
    dims = [("net1", 28 * 28, 8), ("net2", 8, 8), ("net3", 8, 8), ("net4", 8, 10)]
    params = {}
    for name, fan_in, fan_out in dims:
        key, kw, kb = jax.random.split(key, 3)
        bound = 1.0 / jnp.sqrt(fan_in)
        # Stored directly in (in, out) layout (transposed vs PyTorch's (out, in)).
        w = jax.random.uniform(kw, (fan_in, fan_out), jnp.float32, -bound, bound)
        b = jax.random.uniform(kb, (1, fan_out), jnp.float32, -bound, bound)
        params[name] = (w, b)
    return params


def reference_forward(x, params):
    """Plain-JAX f32 reference (matches the kernel math)."""
    h = x
    for name in ("net1", "net2", "net3"):
        w, b = params[name]
        h = jnp.maximum(h @ w + b, 0.0)
    w4, b4 = params["net4"]
    logits = h @ w4 + b4
    return jax.nn.log_softmax(logits, axis=1)


if __name__ == "__main__":
    key = jax.random.PRNGKey(0)
    kx, kp = jax.random.split(key)
    params = init_params(kp)

    # Small single-tile test.
    B = 8
    x = jax.random.normal(kx, (B, 28 * 28), jnp.float32)
    out = jax.block_until_ready(net_forward(x, params))
    ref = reference_forward(x, params)
    assert out.shape == (B, 10)
    assert jnp.allclose(out, ref, atol=1e-4, rtol=1e-4)

    # Larger test exercising the batch-tiled grid + partial boundary block
    # (1000 = 3*256 + 232, so the last tile is partial -> masked writeback).
    B2 = 1000
    x2 = jax.random.normal(kx, (B2, 28 * 28), jnp.float32)
    out2 = jax.block_until_ready(net_forward(x2, params, tb=256))
    ref2 = reference_forward(x2, params)
    assert out2.shape == (B2, 10)
    assert jnp.allclose(out2, ref2, atol=1e-4, rtol=1e-4)

    print("KERNEL_OK")
</pallas_src>

<mosaic_0001>
module attributes {stable_mosaic.version = 11 : i64} {
  func.func @mlp_kernel(%arg0: i32, %arg1: memref<8x784xf32, #tpu.memory_space<vmem>>, %arg2: memref<784x8xf32, #tpu.memory_space<vmem>>, %arg3: memref<1x8xf32, #tpu.memory_space<vmem>>, %arg4: memref<8x8xf32, #tpu.memory_space<vmem>>, %arg5: memref<1x8xf32, #tpu.memory_space<vmem>>, %arg6: memref<8x8xf32, #tpu.memory_space<vmem>>, %arg7: memref<1x8xf32, #tpu.memory_space<vmem>>, %arg8: memref<8x10xf32, #tpu.memory_space<vmem>>, %arg9: memref<1x10xf32, #tpu.memory_space<vmem>>, %arg10: memref<8x10xf32, #tpu.memory_space<vmem>>) attributes {dimension_semantics = [#tpu.dimension_semantics<parallel>], iteration_bounds = array<i64: 1>, scalar_prefetch = 0 : i64, scratch_operands = 0 : i64, tpu.core_type = #tpu.core_type<tc>, window_params = [{transform_indices = @transform_0, window_bounds = array<i64: 8, 784>}, {pipeline_mode = #tpu.pipeline_mode<synchronous>, transform_indices = @transform_1, window_bounds = array<i64: 784, 8>}, {pipeline_mode = #tpu.pipeline_mode<synchronous>, transform_indices = @transform_2, window_bounds = array<i64: 1, 8>}, {pipeline_mode = #tpu.pipeline_mode<synchronous>, transform_indices = @transform_3, window_bounds = array<i64: 8, 8>}, {pipeline_mode = #tpu.pipeline_mode<synchronous>, transform_indices = @transform_4, window_bounds = array<i64: 1, 8>}, {pipeline_mode = #tpu.pipeline_mode<synchronous>, transform_indices = @transform_5, window_bounds = array<i64: 8, 8>}, {pipeline_mode = #tpu.pipeline_mode<synchronous>, transform_indices = @transform_6, window_bounds = array<i64: 1, 8>}, {pipeline_mode = #tpu.pipeline_mode<synchronous>, transform_indices = @transform_7, window_bounds = array<i64: 8, 10>}, {pipeline_mode = #tpu.pipeline_mode<synchronous>, transform_indices = @transform_8, window_bounds = array<i64: 1, 10>}, {transform_indices = @transform_9, window_bounds = array<i64: 8, 10>}]} {
    %c0 = arith.constant 0 : index
    %c0_0 = arith.constant 0 : index
    %0 = vector.load %arg1[%c0, %c0_0] : memref<8x784xf32, #tpu.memory_space<vmem>>, vector<8x784xf32>
    %c0_1 = arith.constant 0 : index
    %c0_2 = arith.constant 0 : index
    %1 = vector.load %arg2[%c0_1, %c0_2] : memref<784x8xf32, #tpu.memory_space<vmem>>, vector<784x8xf32>
    %cst = arith.constant dense<0.000000e+00> : vector<8x8xf32>
    %2 = tpu.matmul %0, %1, %cst {dimension_numbers = #tpu.dot_dimension_numbers<[1], [0], [0], [1], [0, 0, 1, 1], [], []>} : vector<8x784xf32>, vector<784x8xf32>, vector<8x8xf32> -> vector<8x8xf32>
    %c0_3 = arith.constant 0 : index
    %c0_4 = arith.constant 0 : index
    %3 = vector.load %arg3[%c0_3, %c0_4] : memref<1x8xf32, #tpu.memory_space<vmem>>, vector<1x8xf32>
    %4 = vector.broadcast %3 : vector<1x8xf32> to vector<8x8xf32>
    %5 = arith.addf %2, %4 : vector<8x8xf32>
    %cst_5 = arith.constant 0.000000e+00 : f32
    %6 = vector.broadcast %cst_5 : f32 to vector<8x8xf32>
    %7 = arith.maximumf %5, %6 : vector<8x8xf32>
    %c0_6 = arith.constant 0 : index
    %c0_7 = arith.constant 0 : index
    %8 = vector.load %arg4[%c0_6, %c0_7] : memref<8x8xf32, #tpu.memory_space<vmem>>, vector<8x8xf32>
    %cst_8 = arith.constant dense<0.000000e+00> : vector<8x8xf32>
    %9 = tpu.matmul %7, %8, %cst_8 {dimension_numbers = #tpu.dot_dimension_numbers<[1], [0], [0], [1], [0, 0, 1, 1], [], []>} : vector<8x8xf32>, vector<8x8xf32>, vector<8x8xf32> -> vector<8x8xf32>
    %c0_9 = arith.constant 0 : index
    %c0_10 = arith.constant 0 : index
    %10 = vector.load %arg5[%c0_9, %c0_10] : memref<1x8xf32, #tpu.memory_space<vmem>>, vector<1x8xf32>
    %11 = vector.broadcast %10 : vector<1x8xf32> to vector<8x8xf32>
    %12 = arith.addf %9, %11 : vector<8x8xf32>
    %cst_11 = arith.constant 0.000000e+00 : f32
    %13 = vector.broadcast %cst_11 : f32 to vector<8x8xf32>
    %14 = arith.maximumf %12, %13 : vector<8x8xf32>
    %c0_12 = arith.constant 0 : index
    %c0_13 = arith.constant 0 : index
    %15 = vector.load %arg6[%c0_12, %c0_13] : memref<8x8xf32, #tpu.memory_space<vmem>>, vector<8x8xf32>
    %cst_14 = arith.constant dense<0.000000e+00> : vector<8x8xf32>
    %16 = tpu.matmul %14, %15, %cst_14 {dimension_numbers = #tpu.dot_dimension_numbers<[1], [0], [0], [1], [0, 0, 1, 1], [], []>} : vector<8x8xf32>, vector<8x8xf32>, vector<8x8xf32> -> vector<8x8xf32>
    %c0_15 = arith.constant 0 : index
    %c0_16 = arith.constant 0 : index
    %17 = vector.load %arg7[%c0_15, %c0_16] : memref<1x8xf32, #tpu.memory_space<vmem>>, vector<1x8xf32>
    %18 = vector.broadcast %17 : vector<1x8xf32> to vector<8x8xf32>
    %19 = arith.addf %16, %18 : vector<8x8xf32>
    %cst_17 = arith.constant 0.000000e+00 : f32
    %20 = vector.broadcast %cst_17 : f32 to vector<8x8xf32>
    %21 = arith.maximumf %19, %20 : vector<8x8xf32>
    %c0_18 = arith.constant 0 : index
    %c0_19 = arith.constant 0 : index
    %22 = vector.load %arg8[%c0_18, %c0_19] : memref<8x10xf32, #tpu.memory_space<vmem>>, vector<8x10xf32>
    %cst_20 = arith.constant dense<0.000000e+00> : vector<8x10xf32>
    %23 = tpu.matmul %21, %22, %cst_20 {dimension_numbers = #tpu.dot_dimension_numbers<[1], [0], [0], [1], [0, 0, 1, 1], [], []>} : vector<8x8xf32>, vector<8x10xf32>, vector<8x10xf32> -> vector<8x10xf32>
    %c0_21 = arith.constant 0 : index
    %c0_22 = arith.constant 0 : index
    %24 = vector.load %arg9[%c0_21, %c0_22] : memref<1x10xf32, #tpu.memory_space<vmem>>, vector<1x10xf32>
    %25 = vector.broadcast %24 : vector<1x10xf32> to vector<8x10xf32>
    %26 = arith.addf %23, %25 : vector<8x10xf32>
    %cst_23 = arith.constant dense<0xFF800000> : vector<8xf32>
    %27 = vector.multi_reduction <maximumf>, %26, %cst_23 [1] : vector<8x10xf32> to vector<8xf32>
    %28 = vector.shape_cast %27 : vector<8xf32> to vector<8x1xf32>
    %29 = vector.broadcast %28 : vector<8x1xf32> to vector<8x10xf32>
    %30 = arith.subf %26, %29 : vector<8x10xf32>
    %31 = math.exp %30 : vector<8x10xf32>
    %cst_24 = arith.constant dense<0.000000e+00> : vector<8xf32>
    %32 = vector.multi_reduction <add>, %31, %cst_24 [1] : vector<8x10xf32> to vector<8xf32>
    %33 = vector.shape_cast %32 : vector<8xf32> to vector<8x1xf32>
    %34 = math.log %33 : vector<8x1xf32>
    %35 = vector.broadcast %34 : vector<8x1xf32> to vector<8x10xf32>
    %36 = arith.subf %30, %35 : vector<8x10xf32>
    %c0_25 = arith.constant 0 : index
    %c0_26 = arith.constant 0 : index
    %37 = vector.load %arg10[%c0_25, %c0_26] : memref<8x10xf32, #tpu.memory_space<vmem>>, vector<8x10xf32>
    tpu.vector_store %arg10[%c0_25, %c0_26], %36 {strides = array<i32>} : memref<8x10xf32, #tpu.memory_space<vmem>>, vector<8x10xf32>,
    return
  }
  func.func @transform_0(%arg0: i32) -> (i32, i32) {
    %c0_i32 = arith.constant 0 : i32
    %c0_i32_0 = arith.constant 0 : i32
    return %arg0, %c0_i32 : i32, i32
  }
  func.func @transform_1(%arg0: i32) -> (i32, i32) {
    %c0_i32 = arith.constant 0 : i32
    %c0_i32_0 = arith.constant 0 : i32
    %c0_i32_1 = arith.constant 0 : i32
    return %c0_i32, %c0_i32_0 : i32, i32
  }
  func.func @transform_2(%arg0: i32) -> (i32, i32) {
    %c0_i32 = arith.constant 0 : i32
    %c0_i32_0 = arith.constant 0 : i32
    %c0_i32_1 = arith.constant 0 : i32
    return %c0_i32, %c0_i32_0 : i32, i32
  }
  func.func @transform_3(%arg0: i32) -> (i32, i32) {
    %c0_i32 = arith.constant 0 : i32
    %c0_i32_0 = arith.constant 0 : i32
    %c0_i32_1 = arith.constant 0 : i32
    return %c0_i32, %c0_i32_0 : i32, i32
  }
  func.func @transform_4(%arg0: i32) -> (i32, i32) {
    %c0_i32 = arith.constant 0 : i32
    %c0_i32_0 = arith.constant 0 : i32
    %c0_i32_1 = arith.constant 0 : i32
    return %c0_i32, %c0_i32_0 : i32, i32
  }
  func.func @transform_5(%arg0: i32) -> (i32, i32) {
    %c0_i32 = arith.constant 0 : i32
    %c0_i32_0 = arith.constant 0 : i32
    %c0_i32_1 = arith.constant 0 : i32
    return %c0_i32, %c0_i32_0 : i32, i32
  }
  func.func @transform_6(%arg0: i32) -> (i32, i32) {
    %c0_i32 = arith.constant 0 : i32
    %c0_i32_0 = arith.constant 0 : i32
    %c0_i32_1 = arith.constant 0 : i32
    return %c0_i32, %c0_i32_0 : i32, i32
  }
  func.func @transform_7(%arg0: i32) -> (i32, i32) {
    %c0_i32 = arith.constant 0 : i32
    %c0_i32_0 = arith.constant 0 : i32
    %c0_i32_1 = arith.constant 0 : i32
    return %c0_i32, %c0_i32_0 : i32, i32
  }
  func.func @transform_8(%arg0: i32) -> (i32, i32) {
    %c0_i32 = arith.constant 0 : i32
    %c0_i32_0 = arith.constant 0 : i32
    %c0_i32_1 = arith.constant 0 : i32
    return %c0_i32, %c0_i32_0 : i32, i32
  }
  func.func @transform_9(%arg0: i32) -> (i32, i32) {
    %c0_i32 = arith.constant 0 : i32
    %c0_i32_0 = arith.constant 0 : i32
    return %arg0, %c0_i32 : i32, i32
  }
}

</mosaic_0001>

<llo_original>
// kernel: tpu_custom_call.1
$region0: #{tpu_custom_call.1}
  #allocation0 [shape = 'u32[]', space=smem, size = 0x4, offset = 0x4, fixed_abs, tag = 'smem constant byte address 0x4 - core index']
  #allocation1 [shape = 'u32[144,128]{1,0:T(1,128)}', space=vmem, size = 0x12000, scoped, tag = 'internal scratch']
  %s0 = inlined_call_operand.vmem [shape: f32[8,784], index: 0, kind: input, shape index: {}]
  %s1 = inlined_call_operand.vmem [shape: f32[784,8], index: 1, kind: input, shape index: {}]
  %s2 = inlined_call_operand.vmem [shape: f32[1,8], index: 2, kind: input, shape index: {}]
  %s3 = inlined_call_operand.vmem [shape: f32[8,8], index: 3, kind: input, shape index: {}]
  %s4 = inlined_call_operand.vmem [shape: f32[1,8], index: 4, kind: input, shape index: {}]
  %s5 = inlined_call_operand.vmem [shape: f32[8,8], index: 5, kind: input, shape index: {}]
  %s6 = inlined_call_operand.vmem [shape: f32[1,8], index: 6, kind: input, shape index: {}]
  %s7 = inlined_call_operand.vmem [shape: f32[8,10], index: 7, kind: input, shape index: {}]
  %s8 = inlined_call_operand.vmem [shape: f32[1,10], index: 8, kind: input, shape index: {}]
  %s9 = inlined_call_operand.hbm [shape: f32[8,10], index: 9, kind: output, shape index: {}]
  %s10 = sld [smem:[#allocation0]]
  $region46: #{tpu_custom_call.1} parent=0
    _
  %s12 = ssub.s32 1, %s10
  %s13 = scalar_select 0, %s12, %s10
  $region1: #{tpu_custom_call.1} parent=0
    #allocation2 [shape = 'u8[4096]{0}', space=vmem, size = 0x1000, scoped, tag = 'output window, operand 0, single buffered']
    #allocation3 [shape = 's32[1]{0}', space=sflag, size = 0x4, scoped, tag = 'scoped memory for tpu_custom_call.1']
    %14 = vsyncpa [#allocation3], 0
    // Predicated region
    $region2: #{tpu_custom_call.1} parent=1 // pred_check
      _
    $region3: #{tpu_custom_call.1} parent=1 // pred_check_branch
      %16 = sbr.rel (0) target = $region5
    $region4: #{tpu_custom_call.1} parent=1 // pred_region
      _
    $region5: #{tpu_custom_call.1} parent=1 // pred_fallthru
      _
    // Predicated region
    $region6: #{tpu_custom_call.1} parent=1 // pred_check
      _
    $region7: #{tpu_custom_call.1} parent=1 // pred_check_branch
      %18 = sbr.rel (0) target = $region9
    $region8: #{tpu_custom_call.1} parent=1 // pred_region
      _
    $region9: #{tpu_custom_call.1} parent=1 // pred_fallthru
      _
    // Predicated region
    $region10: #{tpu_custom_call.1} parent=1 // pred_check
      _
    $region11: #{tpu_custom_call.1} parent=1 // pred_check_branch
      %20 = sbr.rel (0) target = $region13
    $region12: #{tpu_custom_call.1} parent=1 // pred_region
      _
    $region13: #{tpu_custom_call.1} parent=1 // pred_fallthru
      _
    // Predicated region
    $region14: #{tpu_custom_call.1} parent=1 // pred_check
      _
    $region15: #{tpu_custom_call.1} parent=1 // pred_check_branch
      %22 = sbr.rel (0) target = $region17
    $region16: #{tpu_custom_call.1} parent=1 // pred_region
      _
    $region17: #{tpu_custom_call.1} parent=1 // pred_fallthru
      _
    // Predicated region
    $region18: #{tpu_custom_call.1} parent=1 // pred_check
      _
    $region19: #{tpu_custom_call.1} parent=1 // pred_check_branch
      %24 = sbr.rel (0) target = $region21
    $region20: #{tpu_custom_call.1} parent=1 // pred_region
      _
    $region21: #{tpu_custom_call.1} parent=1 // pred_fallthru
      _
    // Predicated region
    $region22: #{tpu_custom_call.1} parent=1 // pred_check
      _
    $region23: #{tpu_custom_call.1} parent=1 // pred_check_branch
      %26 = sbr.rel (0) target = $region25
    $region24: #{tpu_custom_call.1} parent=1 // pred_region
      _
    $region25: #{tpu_custom_call.1} parent=1 // pred_fallthru
      _
    // Predicated region
    $region26: #{tpu_custom_call.1} parent=1 // pred_check
      _
    $region27: #{tpu_custom_call.1} parent=1 // pred_check_branch
      %28 = sbr.rel (0) target = $region29
    $region28: #{tpu_custom_call.1} parent=1 // pred_region
      _
    $region29: #{tpu_custom_call.1} parent=1 // pred_fallthru
      _
    // Predicated region
    $region30: #{tpu_custom_call.1} parent=1 // pred_check
      _
    $region31: #{tpu_custom_call.1} parent=1 // pred_check_branch
      %30 = sbr.rel (0) target = $region33
    $region32: #{tpu_custom_call.1} parent=1 // pred_region
      _
    $region33: #{tpu_custom_call.1} parent=1 // pred_fallthru
      _
    // Predicated region
    $region34: #{tpu_custom_call.1} parent=1 // pred_check
      _
    $region35: #{tpu_custom_call.1} parent=1 // pred_check_branch
      %32 = sbr.rel (0) target = $region37
    $region36: #{tpu_custom_call.1} parent=1 // pred_region
      _
    $region37: #{tpu_custom_call.1} parent=1 // pred_fallthru
      _
    %v33 = vld [vmem:[%s0] sm:$0xff]
    %v34 = vld [vmem:[%s0 + $0x8] sm:$0xff]
    %v35 = vld [vmem:[%s0 + $0x10] sm:$0xff]
    %v36 = vld [vmem:[%s0 + $0x18] sm:$0xff]
    %v37 = vld [vmem:[%s0 + $0x20] sm:$0xff]
    %v38 = vld [vmem:[%s0 + $0x28] sm:$0xff]
    %v39 = vld [vmem:[%s0 + $0x30] sm:$0xff]
    %v40 = vld [vmem:[%s1] sm:$0xff]
    %v41 = vld [vmem:[%s1 + $0x8] sm:$0xff]
    %v42 = vld [vmem:[%s1 + $0x10] sm:$0xff]
    %v43 = vld [vmem:[%s1 + $0x18] sm:$0xff]
    %v44 = vld [vmem:[%s1 + $0x20] sm:$0xff]
    %v45 = vld [vmem:[%s1 + $0x28] sm:$0xff]
    %v46 = vld [vmem:[%s1 + $0x30] sm:$0xff]
    %v47 = vld [vmem:[%s1 + $0x38] sm:$0xff]
    %v48 = vld [vmem:[%s1 + $0x40] sm:$0xff]
    %v49 = vld [vmem:[%s1 + $0x48] sm:$0xff]
    %v50 = vld [vmem:[%s1 + $0x50] sm:$0xff]
    %v51 = vld [vmem:[%s1 + $0x58] sm:$0xff]
    %v52 = vld [vmem:[%s1 + $0x60] sm:$0xff]
    %v53 = vld [vmem:[%s1 + $0x68] sm:$0xff]
    %v54 = vld [vmem:[%s1 + $0x70] sm:$0xff]
    %v55 = vld [vmem:[%s1 + $0x78] sm:$0xff]
    %v56 = vld [vmem:[%s1 + $0x80] sm:$0xff]
    %v57 = vld [vmem:[%s1 + $0x88] sm:$0xff]
    %v58 = vld [vmem:[%s1 + $0x90] sm:$0xff]
    %v59 = vld [vmem:[%s1 + $0x98] sm:$0xff]
    %v60 = vld [vmem:[%s1 + $0xa0] sm:$0xff]
    %v61 = vld [vmem:[%s1 + $0xa8] sm:$0xff]
    %v62 = vld [vmem:[%s1 + $0xb0] sm:$0xff]
    %v63 = vld [vmem:[%s1 + $0xb8] sm:$0xff]
    %v64 = vld [vmem:[%s1 + $0xc0] sm:$0xff]
    %v65 = vld [vmem:[%s1 + $0xc8] sm:$0xff]
    %v66 = vld [vmem:[%s1 + $0xd0] sm:$0xff]
    %v67 = vld [vmem:[%s1 + $0xd8] sm:$0xff]
    %v68 = vld [vmem:[%s1 + $0xe0] sm:$0xff]
    %v69 = vld [vmem:[%s1 + $0xe8] sm:$0xff]
    %v70 = vld [vmem:[%s1 + $0xf0] sm:$0xff]
    %v71 = vld [vmem:[%s1 + $0xf8] sm:$0xff]
    %v72 = vld [vmem:[%s1 + $0x100] sm:$0xff]
    %v73 = vld [vmem:[%s1 + $0x108] sm:$0xff]
    %v74 = vld [vmem:[%s1 + $0x110] sm:$0xff]
    %v75 = vld [vmem:[%s1 + $0x118] sm:$0xff]
    %v76 = vld [vmem:[%s1 + $0x120] sm:$0xff]
    %v77 = vld [vmem:[%s1 + $0x128] sm:$0xff]
    %v78 = vld [vmem:[%s1 + $0x130] sm:$0xff]
    %v79 = vld [vmem:[%s1 + $0x138] sm:$0xff]
    %v80 = vld [vmem:[%s1 + $0x140] sm:$0xff]
    %v81 = vld [vmem:[%s1 + $0x148] sm:$0xff]
    %v82 = vld [vmem:[%s1 + $0x150] sm:$0xff]
    %v83 = vld [vmem:[%s1 + $0x158] sm:$0xff]
    %v84 = vld [vmem:[%s1 + $0x160] sm:$0xff]
    %v85 = vld [vmem:[%s1 + $0x168] sm:$0xff]
    %v86 = vld [vmem:[%s1 + $0x170] sm:$0xff]
    %v87 = vld [vmem:[%s1 + $0x178] sm:$0xff]
    %v88 = vld [vmem:[%s1 + $0x180] sm:$0xff]
    %v89 = vld [vmem:[%s1 + $0x188] sm:$0xff]
    %v90 = vld [vmem:[%s1 + $0x190] sm:$0xff]
    %v91 = vld [vmem:[%s1 + $0x198] sm:$0xff]
    %v92 = vld [vmem:[%s1 + $0x1a0] sm:$0xff]
    %v93 = vld [vmem:[%s1 + $0x1a8] sm:$0xff]
    %v94 = vld [vmem:[%s1 + $0x1b0] sm:$0xff]
    %v95 = vld [vmem:[%s1 + $0x1b8] sm:$0xff]
    %v96 = vld [vmem:[%s1 + $0x1c0] sm:$0xff]
    %v97 = vld [vmem:[%s1 + $0x1c8] sm:$0xff]
    %v98 = vld [vmem:[%s1 + $0x1d0] sm:$0xff]
    %v99 = vld [vmem:[%s1 + $0x1d8] sm:$0xff]
    %v100 = vld [vmem:[%s1 + $0x1e0] sm:$0xff]
    %v101 = vld [vmem:[%s1 + $0x1e8] sm:$0xff]
    %v102 = vld [vmem:[%s1 + $0x1f0] sm:$0xff]
    %v103 = vld [vmem:[%s1 + $0x1f8] sm:$0xff]
    %v104 = vld [vmem:[%s1 + $0x200] sm:$0xff]
    %v105 = vld [vmem:[%s1 + $0x208] sm:$0xff]
    %v106 = vld [vmem:[%s1 + $0x210] sm:$0xff]
    %v107 = vld [vmem:[%s1 + $0x218] sm:$0xff]
    %v108 = vld [vmem:[%s1 + $0x220] sm:$0xff]
    %v109 = vld [vmem:[%s1 + $0x228] sm:$0xff]
    %v110 = vld [vmem:[%s1 + $0x230] sm:$0xff]
    %v111 = vld [vmem:[%s1 + $0x238] sm:$0xff]
    %v112 = vld [vmem:[%s1 + $0x240] sm:$0xff]
    %v113 = vld [vmem:[%s1 + $0x248] sm:$0xff]
    %v114 = vld [vmem:[%s1 + $0x250] sm:$0xff]
    %v115 = vld [vmem:[%s1 + $0x258] sm:$0xff]
    %v116 = vld [vmem:[%s1 + $0x260] sm:$0xff]
    %v117 = vld [vmem:[%s1 + $0x268] sm:$0xff]
    %v118 = vld [vmem:[%s1 + $0x270] sm:$0xff]
    %v119 = vld [vmem:[%s1 + $0x278] sm:$0xff]
    %v120 = vld [vmem:[%s1 + $0x280] sm:$0xff]
    %v121 = vld [vmem:[%s1 + $0x288] sm:$0xff]
    %v122 = vld [vmem:[%s1 + $0x290] sm:$0xff]
    %v123 = vld [vmem:[%s1 + $0x298] sm:$0xff]
    %v124 = vld [vmem:[%s1 + $0x2a0] sm:$0xff]
    %v125 = vld [vmem:[%s1 + $0x2a8] sm:$0xff]
    %v126 = vld [vmem:[%s1 + $0x2b0] sm:$0xff]
    %v127 = vld [vmem:[%s1 + $0x2b8] sm:$0xff]
    %v128 = vld [vmem:[%s1 + $0x2c0] sm:$0xff]
    %v129 = vld [vmem:[%s1 + $0x2c8] sm:$0xff]
    %v130 = vld [vmem:[%s1 + $0x2d0] sm:$0xff]
    %v131 = vld [vmem:[%s1 + $0x2d8] sm:$0xff]
    %v132 = vld [vmem:[%s1 + $0x2e0] sm:$0xff]
    %v133 = vld [vmem:[%s1 + $0x2e8] sm:$0xff]
    %v134 = vld [vmem:[%s1 + $0x2f0] sm:$0xff]
    %v135 = vld [vmem:[%s1 + $0x2f8] sm:$0xff]
    %v136 = vld [vmem:[%s1 + $0x300] sm:$0xff]
    %v137 = vld [vmem:[%s1 + $0x308] sm:$0xff]
    %v138 = vld [vmem:[%s2] sm:$0x1]
    %v140 = vlaneseq
    %v141 = vshrl.u32 %v140, 7
    %v142 = vsub.s32 0, %v141
    %v143 = vrot.slane %v138, %v142
    %vm145 = vcmask 130048
    %v147 = vsel %vm145, %v39, 0
    %149 = vmatprep.subr.mxu0 0.0
    %150 = vmatpush1.msra.mxu0 %v55
    %151 = vmatprep.subr.mxu0 0.0
    %152 = vmatpush1.msra.mxu0 %v54
    %153 = vmatprep.subr.mxu0 0.0
    %154 = vmatpush1.msra.mxu0 %v53
    %155 = vmatprep.subr.mxu0 0.0
    %156 = vmatpush1.msra.mxu0 %v52
    %157 = vmatprep.subr.mxu0 0.0
    %158 = vmatpush1.msra.mxu0 %v51
    %159 = vmatprep.subr.mxu0 0.0
    %160 = vmatpush1.msra.mxu0 %v50
    %161 = vmatprep.subr.mxu0 0.0
    %162 = vmatpush1.msra.mxu0 %v49
    %163 = vmatprep.subr.mxu0 0.0
    %164 = vmatpush1.msra.mxu0 %v48
    %165 = vmatprep.subr.mxu0 0.0
    %166 = vmatpush1.msra.mxu0 %v47
    %167 = vmatprep.subr.mxu0 0.0
    %168 = vmatpush1.msra.mxu0 %v46
    %169 = vmatprep.subr.mxu0 0.0
    %170 = vmatpush1.msra.mxu0 %v45
    %171 = vmatprep.subr.mxu0 0.0
    %172 = vmatpush1.msra.mxu0 %v44
    %173 = vmatprep.subr.mxu0 0.0
    %174 = vmatpush1.msra.mxu0 %v43
    %175 = vmatprep.subr.mxu0 0.0
    %176 = vmatpush1.msra.mxu0 %v42
    %177 = vmatprep.subr.mxu0 0.0
    %178 = vmatpush1.msra.mxu0 %v41
    %179 = vmatprep.subr.mxu0 0.0
    %180 = vmatpush1.msra.mxu0 %v40
    %181 = vmatprep.subr.mxu0 0.0
    %182 = vmatpush2.msra.mxu0 %v71
    %183 = vmatprep.subr.mxu0 0.0
    %184 = vmatpush2.msra.mxu0 %v70
    %185 = vmatprep.subr.mxu0 0.0
    %186 = vmatpush2.msra.mxu0 %v69
    %187 = vmatprep.subr.mxu0 0.0
    %188 = vmatpush2.msra.mxu0 %v68
    %189 = vmatprep.subr.mxu0 0.0
    %190 = vmatpush2.msra.mxu0 %v67
    %191 = vmatprep.subr.mxu0 0.0
    %192 = vmatpush2.msra.mxu0 %v66
    %193 = vmatprep.subr.mxu0 0.0
    %194 = vmatpush2.msra.mxu0 %v65
    %195 = vmatprep.subr.mxu0 0.0
    %196 = vmatpush2.msra.mxu0 %v64
    %197 = vmatprep.subr.mxu0 0.0
    %198 = vmatpush2.msra.mxu0 %v63
    %199 = vmatprep.subr.mxu0 0.0
    %200 = vmatpush2.msra.mxu0 %v62
    %201 = vmatprep.subr.mxu0 0.0
    %202 = vmatpush2.msra.mxu0 %v61
    %203 = vmatprep.subr.mxu0 0.0
    %204 = vmatpush2.msra.mxu0 %v60
    %205 = vmatprep.subr.mxu0 0.0
    %206 = vmatpush2.msra.mxu0 %v59
    %207 = vmatprep.subr.mxu0 0.0
    %208 = vmatpush2.msra.mxu0 %v58
    %209 = vmatprep.subr.mxu0 0.0
    %210 = vmatpush2.msra.mxu0 %v57
    %211 = vmatprep.subr.mxu0 0.0
    %212 = vmatpush2.msra.mxu0 %v56
    %213 = vmatprep.mubr.f32.mxu0 %v34
    %214 = vmatmul.mubr.f32.gmra.mxu0 %v33
    %v215 = vpop.f32.mrf.mxu0
    %v216 = vadd.f32 %v143, %v215
    %v217 = vpop.f32.mrf.mxu0
    %218 = vdwg.mxu0
    %219 = vmatprep.subr.mxu0 0.0
    %220 = vmatpush1.msra.mxu0 %v87
    %221 = vmatprep.subr.mxu0 0.0
    %222 = vmatpush1.msra.mxu0 %v86
    %223 = vmatprep.subr.mxu0 0.0
    %224 = vmatpush1.msra.mxu0 %v85
    %225 = vmatprep.subr.mxu0 0.0
    %226 = vmatpush1.msra.mxu0 %v84
    %227 = vmatprep.subr.mxu0 0.0
    %228 = vmatpush1.msra.mxu0 %v83
    %229 = vmatprep.subr.mxu0 0.0
    %230 = vmatpush1.msra.mxu0 %v82
    %231 = vmatprep.subr.mxu0 0.0
    %232 = vmatpush1.msra.mxu0 %v81
    %233 = vmatprep.subr.mxu0 0.0
    %234 = vmatpush1.msra.mxu0 %v80
    %235 = vmatprep.subr.mxu0 0.0
    %236 = vmatpush1.msra.mxu0 %v79
    %237 = vmatprep.subr.mxu0 0.0
    %238 = vmatpush1.msra.mxu0 %v78
    %239 = vmatprep.subr.mxu0 0.0
    %240 = vmatpush1.msra.mxu0 %v77
    %241 = vmatprep.subr.mxu0 0.0
    %242 = vmatpush1.msra.mxu0 %v76
    %243 = vmatprep.subr.mxu0 0.0
    %244 = vmatpush1.msra.mxu0 %v75
    %245 = vmatprep.subr.mxu0 0.0
    %246 = vmatpush1.msra.mxu0 %v74
    %247 = vmatprep.subr.mxu0 0.0
    %248 = vmatpush1.msra.mxu0 %v73
    %249 = vmatprep.subr.mxu0 0.0
    %250 = vmatpush1.msra.mxu0 %v72
    %251 = vmatprep.subr.mxu0 0.0
    %252 = vmatpush2.msra.mxu0 %v103
    %253 = vmatprep.subr.mxu0 0.0
    %254 = vmatpush2.msra.mxu0 %v102
    %255 = vmatprep.subr.mxu0 0.0
    %256 = vmatpush2.msra.mxu0 %v101
    %257 = vmatprep.subr.mxu0 0.0
    %258 = vmatpush2.msra.mxu0 %v100
    %259 = vmatprep.subr.mxu0 0.0
    %260 = vmatpush2.msra.mxu0 %v99
    %261 = vmatprep.subr.mxu0 0.0
    %262 = vmatpush2.msra.mxu0 %v98
    %263 = vmatprep.subr.mxu0 0.0
    %264 = vmatpush2.msra.mxu0 %v97
    %265 = vmatprep.subr.mxu0 0.0
    %266 = vmatpush2.msra.mxu0 %v96
    %267 = vmatprep.subr.mxu0 0.0
    %268 = vmatpush2.msra.mxu0 %v95
    %269 = vmatprep.subr.mxu0 0.0
    %270 = vmatpush2.msra.mxu0 %v94
    %271 = vmatprep.subr.mxu0 0.0
    %272 = vmatpush2.msra.mxu0 %v93
    %273 = vmatprep.subr.mxu0 0.0
    %274 = vmatpush2.msra.mxu0 %v92
    %275 = vmatprep.subr.mxu0 0.0
    %276 = vmatpush2.msra.mxu0 %v91
    %277 = vmatprep.subr.mxu0 0.0
    %278 = vmatpush2.msra.mxu0 %v90
    %279 = vmatprep.subr.mxu0 0.0
    %280 = vmatpush2.msra.mxu0 %v89
    %281 = vmatprep.subr.mxu0 0.0
    %282 = vmatpush2.msra.mxu0 %v88
    %283 = vmatprep.mubr.f32.mxu0 %v36
    %284 = vmatmul.mubr.f32.gmra.mxu0 %v35
    %v285 = vpop.f32.mrf.mxu0
    %v286 = vadd.f32 %v216, %v285
    %v287 = vpop.f32.mrf.mxu0
    %288 = vdwg.mxu0
    %289 = vmatprep.subr.mxu0 0.0
    %290 = vmatpush1.msra.mxu0 %v119
    %291 = vmatprep.subr.mxu0 0.0
    %292 = vmatpush1.msra.mxu0 %v118
    %293 = vmatprep.subr.mxu0 0.0
    %294 = vmatpush1.msra.mxu0 %v117
    %295 = vmatprep.subr.mxu0 0.0
    %296 = vmatpush1.msra.mxu0 %v116
    %297 = vmatprep.subr.mxu0 0.0
    %298 = vmatpush1.msra.mxu0 %v115
    %299 = vmatprep.subr.mxu0 0.0
    %300 = vmatpush1.msra.mxu0 %v114
    %301 = vmatprep.subr.mxu0 0.0
    %302 = vmatpush1.msra.mxu0 %v113
    %303 = vmatprep.subr.mxu0 0.0
    %304 = vmatpush1.msra.mxu0 %v112
    %305 = vmatprep.subr.mxu0 0.0
    %306 = vmatpush1.msra.mxu0 %v111
    %307 = vmatprep.subr.mxu0 0.0
    %308 = vmatpush1.msra.mxu0 %v110
    %309 = vmatprep.subr.mxu0 0.0
    %310 = vmatpush1.msra.mxu0 %v109
    %311 = vmatprep.subr.mxu0 0.0
    %312 = vmatpush1.msra.mxu0 %v108
    %313 = vmatprep.subr.mxu0 0.0
    %314 = vmatpush1.msra.mxu0 %v107
    %315 = vmatprep.subr.mxu0 0.0
    %316 = vmatpush1.msra.mxu0 %v106
    %317 = vmatprep.subr.mxu0 0.0
    %318 = vmatpush1.msra.mxu0 %v105
    %319 = vmatprep.subr.mxu0 0.0
    %320 = vmatpush1.msra.mxu0 %v104
    %321 = vmatprep.subr.mxu0 0.0
    %322 = vmatpush2.msra.mxu0 %v135
    %323 = vmatprep.subr.mxu0 0.0
    %324 = vmatpush2.msra.mxu0 %v134
    %325 = vmatprep.subr.mxu0 0.0
    %326 = vmatpush2.msra.mxu0 %v133
    %327 = vmatprep.subr.mxu0 0.0
    %328 = vmatpush2.msra.mxu0 %v132
    %329 = vmatprep.subr.mxu0 0.0
    %330 = vmatpush2.msra.mxu0 %v131
    %331 = vmatprep.subr.mxu0 0.0
    %332 = vmatpush2.msra.mxu0 %v130
    %333 = vmatprep.subr.mxu0 0.0
    %334 = vmatpush2.msra.mxu0 %v129
    %335 = vmatprep.subr.mxu0 0.0
    %336 = vmatpush2.msra.mxu0 %v128
    %337 = vmatprep.subr.mxu0 0.0
    %338 = vmatpush2.msra.mxu0 %v127
    %339 = vmatprep.subr.mxu0 0.0
    %340 = vmatpush2.msra.mxu0 %v126
    %341 = vmatprep.subr.mxu0 0.0
    %342 = vmatpush2.msra.mxu0 %v125
    %343 = vmatprep.subr.mxu0 0.0
    %344 = vmatpush2.msra.mxu0 %v124
    %345 = vmatprep.subr.mxu0 0.0
    %346 = vmatpush2.msra.mxu0 %v123
    %347 = vmatprep.subr.mxu0 0.0
    %348 = vmatpush2.msra.mxu0 %v122
    %349 = vmatprep.subr.mxu0 0.0
    %350 = vmatpush2.msra.mxu0 %v121
    %351 = vmatprep.subr.mxu0 0.0
    %352 = vmatpush2.msra.mxu0 %v120
    %353 = vmatprep.mubr.f32.mxu0 %v38
    %354 = vmatmul.mubr.f32.gmra.mxu0 %v37
    %v355 = vpop.f32.mrf.mxu0
    %v356 = vadd.f32 %v286, %v355
    %v357 = vpop.f32.mrf.mxu0
    %358 = vdwg.mxu0
    %359 = vmatprep.subr.mxu0 0.0
    %360 = vmatpush1.msra.mxu0 0.0
    %361 = vmatprep.subr.mxu0 0.0
    %362 = vmatpush1.msra.mxu0 0.0
    %363 = vmatprep.subr.mxu0 0.0
    %364 = vmatpush1.msra.mxu0 0.0
    %365 = vmatprep.subr.mxu0 0.0
    %366 = vmatpush1.msra.mxu0 0.0
    %367 = vmatprep.subr.mxu0 0.0
    %368 = vmatpush1.msra.mxu0 0.0
    %369 = vmatprep.subr.mxu0 0.0
    %370 = vmatpush1.msra.mxu0 0.0
    %371 = vmatprep.subr.mxu0 0.0
    %372 = vmatpush1.msra.mxu0 0.0
    %373 = vmatprep.subr.mxu0 0.0
    %374 = vmatpush1.msra.mxu0 0.0
    %375 = vmatprep.subr.mxu0 0.0
    %376 = vmatpush1.msra.mxu0 0.0
    %377 = vmatprep.subr.mxu0 0.0
    %378 = vmatpush1.msra.mxu0 0.0
    %379 = vmatprep.subr.mxu0 0.0
    %380 = vmatpush1.msra.mxu0 0.0
    %381 = vmatprep.subr.mxu0 0.0
    %382 = vmatpush1.msra.mxu0 0.0
    %383 = vmatprep.subr.mxu0 0.0
    %384 = vmatpush1.msra.mxu0 0.0
    %385 = vmatprep.subr.mxu0 0.0
    %386 = vmatpush1.msra.mxu0 0.0
    %387 = vmatprep.subr.mxu0 0.0
    %388 = vmatpush1.msra.mxu0 %v137
    %389 = vmatprep.subr.mxu0 0.0
    %390 = vmatpush1.msra.mxu0 %v136
    %391 = vmatprep.subr.mxu0 0.0
    %392 = vmatpush2.msra.mxu0 0.0
    %393 = vmatprep.subr.mxu0 0.0
    %394 = vmatpush2.msra.mxu0 0.0
    %395 = vmatprep.subr.mxu0 0.0
    %396 = vmatpush2.msra.mxu0 0.0
    %397 = vmatprep.subr.mxu0 0.0
    %398 = vmatpush2.msra.mxu0 0.0
    %399 = vmatprep.subr.mxu0 0.0
    %400 = vmatpush2.msra.mxu0 0.0
    %401 = vmatprep.subr.mxu0 0.0
    %402 = vmatpush2.msra.mxu0 0.0
    %403 = vmatprep.subr.mxu0 0.0
    %404 = vmatpush2.msra.mxu0 0.0
    %405 = vmatprep.subr.mxu0 0.0
    %406 = vmatpush2.msra.mxu0 0.0
    %407 = vmatprep.subr.mxu0 0.0
    %408 = vmatpush2.msra.mxu0 0.0
    %409 = vmatprep.subr.mxu0 0.0
    %410 = vmatpush2.msra.mxu0 0.0
    %411 = vmatprep.subr.mxu0 0.0
    %412 = vmatpush2.msra.mxu0 0.0
    %413 = vmatprep.subr.mxu0 0.0
    %414 = vmatpush2.msra.mxu0 0.0
    %415 = vmatprep.subr.mxu0 0.0
    %416 = vmatpush2.msra.mxu0 0.0
    %417 = vmatprep.subr.mxu0 0.0
    %418 = vmatpush2.msra.mxu0 0.0
    %419 = vmatprep.subr.mxu0 0.0
    %420 = vmatpush2.msra.mxu0 0.0
    %421 = vmatprep.subr.mxu0 0.0
    %422 = vmatpush2.msra.mxu0 0.0
    %423 = vmatprep.mubr.f32.mxu0 0.0
    %424 = vmatmul.mubr.f32.gmra.mxu0 %v147
    %v425 = vpop.f32.mrf.mxu0
    %v426 = vadd.f32 %v356, %v425
    %v427 = vpop.f32.mrf.mxu0
    %428 = vdwg.mxu0
    %v429 = vmax.f32 %v426, 0.0
    %v430 = vld [vmem:[%s3] sm:$0xff]
    %v431 = vld [vmem:[%s4] sm:$0x1]
    %v433 = vlaneseq
    %v434 = vshrl.u32 %v433, 7
    %v435 = vsub.s32 0, %v434
    %v436 = vrot.slane %v431, %v435
    %vm438 = vcmask 64512
    %v440 = vsel %vm438, %v429, 0
    %442 = vmatprep.subr.mxu0 0.0
    %443 = vmatpush1.msra.mxu0 0.0
    %444 = vmatprep.subr.mxu0 0.0
    %445 = vmatpush1.msra.mxu0 0.0
    %446 = vmatprep.subr.mxu0 0.0
    %447 = vmatpush1.msra.mxu0 0.0
    %448 = vmatprep.subr.mxu0 0.0
    %449 = vmatpush1.msra.mxu0 0.0
    %450 = vmatprep.subr.mxu0 0.0
    %451 = vmatpush1.msra.mxu0 0.0
    %452 = vmatprep.subr.mxu0 0.0
    %453 = vmatpush1.msra.mxu0 0.0
    %454 = vmatprep.subr.mxu0 0.0
    %455 = vmatpush1.msra.mxu0 0.0
    %456 = vmatprep.subr.mxu0 0.0
    %457 = vmatpush1.msra.mxu0 0.0
    %458 = vmatprep.subr.mxu0 0.0
    %459 = vmatpush1.msra.mxu0 0.0
    %460 = vmatprep.subr.mxu0 0.0
    %461 = vmatpush1.msra.mxu0 0.0
    %462 = vmatprep.subr.mxu0 0.0
    %463 = vmatpush1.msra.mxu0 0.0
    %464 = vmatprep.subr.mxu0 0.0
    %465 = vmatpush1.msra.mxu0 0.0
    %466 = vmatprep.subr.mxu0 0.0
    %467 = vmatpush1.msra.mxu0 0.0
    %468 = vmatprep.subr.mxu0 0.0
    %469 = vmatpush1.msra.mxu0 0.0
    %470 = vmatprep.subr.mxu0 0.0
    %471 = vmatpush1.msra.mxu0 0.0
    %472 = vmatprep.subr.mxu0 0.0
    %473 = vmatpush1.msra.mxu0 %v430
    %474 = vmatprep.subr.mxu0 0.0
    %475 = vmatpush2.msra.mxu0 0.0
    %476 = vmatprep.subr.mxu0 0.0
    %477 = vmatpush2.msra.mxu0 0.0
    %478 = vmatprep.subr.mxu0 0.0
    %479 = vmatpush2.msra.mxu0 0.0
    %480 = vmatprep.subr.mxu0 0.0
    %481 = vmatpush2.msra.mxu0 0.0
    %482 = vmatprep.subr.mxu0 0.0
    %483 = vmatpush2.msra.mxu0 0.0
    %484 = vmatprep.subr.mxu0 0.0
    %485 = vmatpush2.msra.mxu0 0.0
    %486 = vmatprep.subr.mxu0 0.0
    %487 = vmatpush2.msra.mxu0 0.0
    %488 = vmatprep.subr.mxu0 0.0
    %489 = vmatpush2.msra.mxu0 0.0
    %490 = vmatprep.subr.mxu0 0.0
    %491 = vmatpush2.msra.mxu0 0.0
    %492 = vmatprep.subr.mxu0 0.0
    %493 = vmatpush2.msra.mxu0 0.0
    %494 = vmatprep.subr.mxu0 0.0
    %495 = vmatpush2.msra.mxu0 0.0
    %496 = vmatprep.subr.mxu0 0.0
    %497 = vmatpush2.msra.mxu0 0.0
    %498 = vmatprep.subr.mxu0 0.0
    %499 = vmatpush2.msra.mxu0 0.0
    %500 = vmatprep.subr.mxu0 0.0
    %501 = vmatpush2.msra.mxu0 0.0
    %502 = vmatprep.subr.mxu0 0.0
    %503 = vmatpush2.msra.mxu0 0.0
    %504 = vmatprep.subr.mxu0 0.0
    %505 = vmatpush2.msra.mxu0 0.0
    %506 = vmatprep.mubr.f32.mxu0 0.0
    %507 = vmatmul.mubr.f32.gmra.mxu0 %v440
    %v508 = vpop.f32.mrf.mxu0
    %v509 = vadd.f32 %v436, %v508
    %v510 = vpop.f32.mrf.mxu0
    %511 = vdwg.mxu0
    %v512 = vmax.f32 %v509, 0.0
    %v513 = vld [vmem:[%s5] sm:$0xff]
    %v514 = vld [vmem:[%s6] sm:$0x1]
    %v516 = vlaneseq
    %v517 = vshrl.u32 %v516, 7
    %v518 = vsub.s32 0, %v517
    %v519 = vrot.slane %v514, %v518
    %v522 = vsel %vm438, %v512, 0
    %524 = vmatprep.subr.mxu0 0.0
    %525 = vmatpush1.msra.mxu0 0.0
    %526 = vmatprep.subr.mxu0 0.0
    %527 = vmatpush1.msra.mxu0 0.0
    %528 = vmatprep.subr.mxu0 0.0
    %529 = vmatpush1.msra.mxu0 0.0
    %530 = vmatprep.subr.mxu0 0.0
    %531 = vmatpush1.msra.mxu0 0.0
    %532 = vmatprep.subr.mxu0 0.0
    %533 = vmatpush1.msra.mxu0 0.0
    %534 = vmatprep.subr.mxu0 0.0
    %535 = vmatpush1.msra.mxu0 0.0
    %536 = vmatprep.subr.mxu0 0.0
    %537 = vmatpush1.msra.mxu0 0.0
    %538 = vmatprep.subr.mxu0 0.0
    %539 = vmatpush1.msra.mxu0 0.0
    %540 = vmatprep.subr.mxu0 0.0
    %541 = vmatpush1.msra.mxu0 0.0
    %542 = vmatprep.subr.mxu0 0.0
    %543 = vmatpush1.msra.mxu0 0.0
    %544 = vmatprep.subr.mxu0 0.0
    %545 = vmatpush1.msra.mxu0 0.0
    %546 = vmatprep.subr.mxu0 0.0
    %547 = vmatpush1.msra.mxu0 0.0
    %548 = vmatprep.subr.mxu0 0.0
    %549 = vmatpush1.msra.mxu0 0.0
    %550 = vmatprep.subr.mxu0 0.0
    %551 = vmatpush1.msra.mxu0 0.0
    %552 = vmatprep.subr.mxu0 0.0
    %553 = vmatpush1.msra.mxu0 0.0
    %554 = vmatprep.subr.mxu0 0.0
    %555 = vmatpush1.msra.mxu0 %v513
    %556 = vmatprep.subr.mxu0 0.0
    %557 = vmatpush2.msra.mxu0 0.0
    %558 = vmatprep.subr.mxu0 0.0
    %559 = vmatpush2.msra.mxu0 0.0
    %560 = vmatprep.subr.mxu0 0.0
    %561 = vmatpush2.msra.mxu0 0.0
    %562 = vmatprep.subr.mxu0 0.0
    %563 = vmatpush2.msra.mxu0 0.0
    %564 = vmatprep.subr.mxu0 0.0
    %565 = vmatpush2.msra.mxu0 0.0
    %566 = vmatprep.subr.mxu0 0.0
    %567 = vmatpush2.msra.mxu0 0.0
    %568 = vmatprep.subr.mxu0 0.0
    %569 = vmatpush2.msra.mxu0 0.0
    %570 = vmatprep.subr.mxu0 0.0
    %571 = vmatpush2.msra.mxu0 0.0
    %572 = vmatprep.subr.mxu0 0.0
    %573 = vmatpush2.msra.mxu0 0.0
    %574 = vmatprep.subr.mxu0 0.0
    %575 = vmatpush2.msra.mxu0 0.0
    %576 = vmatprep.subr.mxu0 0.0
    %577 = vmatpush2.msra.mxu0 0.0
    %578 = vmatprep.subr.mxu0 0.0
    %579 = vmatpush2.msra.mxu0 0.0
    %580 = vmatprep.subr.mxu0 0.0
    %581 = vmatpush2.msra.mxu0 0.0
    %582 = vmatprep.subr.mxu0 0.0
    %583 = vmatpush2.msra.mxu0 0.0
    %584 = vmatprep.subr.mxu0 0.0
    %585 = vmatpush2.msra.mxu0 0.0
    %586 = vmatprep.subr.mxu0 0.0
    %587 = vmatpush2.msra.mxu0 0.0
    %588 = vmatprep.mubr.f32.mxu0 0.0
    %589 = vmatmul.mubr.f32.gmra.mxu0 %v522
    %v590 = vpop.f32.mrf.mxu0
    %v591 = vadd.f32 %v519, %v590
    %v592 = vpop.f32.mrf.mxu0
    %593 = vdwg.mxu0
    %v594 = vmax.f32 %v591, 0.0
    %v595 = vld [vmem:[%s7] sm:$0xff]
    %v596 = vld [vmem:[%s8] sm:$0x1]
    %v598 = vlaneseq
    %v599 = vshrl.u32 %v598, 7
    %v600 = vsub.s32 0, %v599
    %v601 = vrot.slane %v596, %v600
    %v604 = vsel %vm438, %v594, 0
    %606 = vmatprep.subr.mxu0 0.0
    %607 = vmatpush1.msra.mxu0 0.0
    %608 = vmatprep.subr.mxu0 0.0
    %609 = vmatpush1.msra.mxu0 0.0
    %610 = vmatprep.subr.mxu0 0.0
    %611 = vmatpush1.msra.mxu0 0.0
    %612 = vmatprep.subr.mxu0 0.0
    %613 = vmatpush1.msra.mxu0 0.0
    %614 = vmatprep.subr.mxu0 0.0
    %615 = vmatpush1.msra.mxu0 0.0
    %616 = vmatprep.subr.mxu0 0.0
    %617 = vmatpush1.msra.mxu0 0.0
    %618 = vmatprep.subr.mxu0 0.0
    %619 = vmatpush1.msra.mxu0 0.0
    %620 = vmatprep.subr.mxu0 0.0
    %621 = vmatpush1.msra.mxu0 0.0
    %622 = vmatprep.subr.mxu0 0.0
    %623 = vmatpush1.msra.mxu0 0.0
    %624 = vmatprep.subr.mxu0 0.0
    %625 = vmatpush1.msra.mxu0 0.0
    %626 = vmatprep.subr.mxu0 0.0
    %627 = vmatpush1.msra.mxu0 0.0
    %628 = vmatprep.subr.mxu0 0.0
    %629 = vmatpush1.msra.mxu0 0.0
    %630 = vmatprep.subr.mxu0 0.0
    %631 = vmatpush1.msra.mxu0 0.0
    %632 = vmatprep.subr.mxu0 0.0
    %633 = vmatpush1.msra.mxu0 0.0
    %634 = vmatprep.subr.mxu0 0.0
    %635 = vmatpush1.msra.mxu0 0.0
    %636 = vmatprep.subr.mxu0 0.0
    %637 = vmatpush1.msra.mxu0 %v595
    %638 = vmatprep.subr.mxu0 0.0
    %639 = vmatpush2.msra.mxu0 0.0
    %640 = vmatprep.subr.mxu0 0.0
    %641 = vmatpush2.msra.mxu0 0.0
    %642 = vmatprep.subr.mxu0 0.0
    %643 = vmatpush2.msra.mxu0 0.0
    %644 = vmatprep.subr.mxu0 0.0
    %645 = vmatpush2.msra.mxu0 0.0
    %646 = vmatprep.subr.mxu0 0.0
    %647 = vmatpush2.msra.mxu0 0.0
    %648 = vmatprep.subr.mxu0 0.0
    %649 = vmatpush2.msra.mxu0 0.0
    %650 = vmatprep.subr.mxu0 0.0
    %651 = vmatpush2.msra.mxu0 0.0
    %652 = vmatprep.subr.mxu0 0.0
    %653 = vmatpush2.msra.mxu0 0.0
    %654 = vmatprep.subr.mxu0 0.0
    %655 = vmatpush2.msra.mxu0 0.0
    %656 = vmatprep.subr.mxu0 0.0
    %657 = vmatpush2.msra.mxu0 0.0
    %658 = vmatprep.subr.mxu0 0.0
    %659 = vmatpush2.msra.mxu0 0.0
    %660 = vmatprep.subr.mxu0 0.0
    %661 = vmatpush2.msra.mxu0 0.0
    %662 = vmatprep.subr.mxu0 0.0
    %663 = vmatpush2.msra.mxu0 0.0
    %664 = vmatprep.subr.mxu0 0.0
    %665 = vmatpush2.msra.mxu0 0.0
    %666 = vmatprep.subr.mxu0 0.0
    %667 = vmatpush2.msra.mxu0 0.0
    %668 = vmatprep.subr.mxu0 0.0
    %669 = vmatpush2.msra.mxu0 0.0
    %670 = vmatprep.mubr.f32.mxu0 0.0
    %671 = vmatmul.mubr.f32.gmra.mxu0 %v604
    %v672 = vpop.f32.mrf.mxu0
    %v673 = vadd.f32 %v601, %v672
    %v674 = vpop.f32.mrf.mxu0
    %675 = vdwg.mxu0
    %vm676 = vcmask 80896
    %v677 = vsel %vm676, %v673, -inf
    %678 = vmax.xlane.f32.xlu0 %v677
    %v679 = vpop.xlane.xlu0 %678
    %v680 = vsub.f32 %v673, %v679
    %v681 = vmul.f32 %v680, 1.442695
    %v682 = vpow.pop %v681
    %v683 = vsel %vm676, %v682, 0.0
    %684 = vadd.xlane.f32.xlu0 %v683
    %v685 = vpop.xlane.xlu0 %684
    %v686 = vlog2.pop %v685
    %v687 = vmul.f32 %v686, 0.6931472
    %v688 = vsub.f32 %v680, %v687
    %689 = vst.msk [vmem:[#allocation2] sm:$0xff] %vm676, %v688
    // Predicated region
    $region38: #{tpu_custom_call.1} parent=1 // pred_check
      _
    $region39: #{tpu_custom_call.1} parent=1 // pred_check_branch
      %691 = sbr.rel (0) target = $region41
    $region40: #{tpu_custom_call.1} parent=1 // pred_region
      %s693 = ssub.s32 128, 128
      %694 = vsyncadd [#allocation3], %s693
      %s696 = sshll.u32 [#allocation2], 4
      %s697 = int_to_ptr.vmem [resolvable:$true] %s696
      %699 = dma.vmem_to_hbm [thread:$0]  %s697, 128, %s9, [#allocation3]
    $region41: #{tpu_custom_call.1} parent=1 // pred_fallthru
      _
    // Predicated region
    $region42: #{tpu_custom_call.1} parent=1 // pred_check
      _
    $region43: #{tpu_custom_call.1} parent=1 // pred_check_branch
      %701 = sbr.rel (0) target = $region45
    $region44: #{tpu_custom_call.1} parent=1 // pred_region
      %702 = dma.done [#allocation3], 128
    $region45: #{tpu_custom_call.1} parent=1 // pred_fallthru
      _
    %703 = vsyncpa [#allocation3], 1

</llo_original>
